<compile_context>
chip_gen: v6e
topology: v6e:2x2x1
jax: 0.10.0
libtpu: 0.0.40
codegen_flags: <defaults>
</compile_context>

<pallas_src>
import jax
import jax.numpy as jnp
from jax.experimental import pallas as pl
from jax.experimental.pallas import tpu as pltpu

IN_FEATURES = 392      # 2 * 14 * 14, matches x.view(-1, 392)
OUT_FEATURES = 2
HIDDEN_PAD = 256       # nb_hidden=250 zero-padded to 2 * 128 lanes
OUT_PAD = 128          # fc2 runs at the 128-lane MXU minimum; store slices [:, :2]


def linear_net_kernel(x_ref, w1_ref, b1_ref, w2_ref, b2_ref, o_ref):
    # x arrives f32 straight from HBM; cast to bf16 in VMEM right before the
    # MXU (avoids a separate wrapper cast pass over x in HBM).
    x_bf16 = x_ref[...].astype(jnp.bfloat16)
    # fc1: (tb, 392) @ (392, 256) on the MXU, f32 accumulation.
    h = jnp.dot(x_bf16, w1_ref[...], preferred_element_type=jnp.float32)
    # bias + ReLU on the VPU (bias kept in f32).
    h = jnp.maximum(h + b1_ref[...], 0.0)
    # fc2: (tb, 256) @ (256, 128) -- padded to the 128-lane MXU minimum.
    out = jnp.dot(h.astype(jnp.bfloat16), w2_ref[...],
                  preferred_element_type=jnp.float32)
    out = out + b2_ref[...]
    # Store only the 2 real logit columns: masked vst, hidden under the DMA,
    # and it shrinks the HBM writeback by 64x vs the 128-lane padded output.
    o_ref[...] = out[:, :OUT_FEATURES].astype(o_ref.dtype)


def _round_up(n, m):
    return ((n + m - 1) // m) * m


def prepare_params(w1, b1, w2, b2):
    """Pad + cast the weights once (hoisted out of the per-call forward path).

    w1: (392, H), b1: (H,), w2: (H, 2), b2: (2,) with H = nb_hidden (<= 256).
    Zero padding is mathematically inert through matmul / ReLU / add.
    """
    H = w1.shape[1]
    w1p = jnp.pad(w1.astype(jnp.bfloat16), ((0, 0), (0, HIDDEN_PAD - H)))
    b1p = jnp.pad(b1.astype(jnp.float32), (0, HIDDEN_PAD - H)).reshape(1, HIDDEN_PAD)
    w2p = jnp.pad(w2.astype(jnp.bfloat16),
                  ((0, HIDDEN_PAD - H), (0, OUT_PAD - OUT_FEATURES)))
    b2p = jnp.pad(b2.astype(jnp.float32),
                  (0, OUT_PAD - OUT_FEATURES)).reshape(1, OUT_PAD)
    return w1p, b1p, w2p, b2p


def linear_net_forward(x_nchw, params, *, block_b=4096, min_pallas_batch=256):
    """Forward pass of LinearNet.

    x_nchw: (B, 2, 14, 14) float32 (NCHW, like the PyTorch module)
    params: output of prepare_params (padded bf16 weights, f32 biases)
    Returns (logits of shape (B, 2), None), matching the PyTorch return tuple.
    """
    w1p, b1p, w2p, b2p = params
    B = x_nchw.shape[0]
    x = x_nchw.reshape(B, IN_FEATURES)          # free reshape, stays f32

    if B < min_pallas_batch:
        # Tiny-batch path: pallas_call fixed cost + wrapper ops would dominate;
        # let XLA's fused GEMM path handle it.
        h = jnp.maximum(
            jnp.dot(x.astype(jnp.bfloat16), w1p,
                    preferred_element_type=jnp.float32) + b1p, 0.0)
        out = jnp.dot(h.astype(jnp.bfloat16), w2p,
                      preferred_element_type=jnp.float32) + b2p
        return out[:, :OUT_FEATURES], None

    # Batch tile: multiple of 16 sublanes (bf16 vreg tile), capped by block_b
    # (VMEM) and sized so large batches get >= 4 grid steps (v7x megacore +
    # something to pipeline). No batch padding: grid = cdiv; the ragged last
    # block's OOB input rows are unspecified and its OOB output rows are
    # dropped by Pallas (rows are independent -> safe).
    tb = min(block_b, _round_up(-(-B // 4), 16))
    if tb >= B:
        tb = B                      # whole batch in one block (dims == array dims)
    grid = (pl.cdiv(B, tb),)

    flops = 2 * B * IN_FEATURES * HIDDEN_PAD + 2 * B * HIDDEN_PAD * OUT_PAD
    bytes_accessed = (B * IN_FEATURES * 4                # x (f32, read once)
                      + w1p.size * 2 + w2p.size * 2      # weights (bf16)
                      + b1p.size * 4 + b2p.size * 4      # biases (f32)
                      + B * OUT_FEATURES * 4)            # narrow f32 output
    cost = pl.CostEstimate(flops=flops, transcendentals=0,
                           bytes_accessed=bytes_accessed)

    logits = pl.pallas_call(
        linear_net_kernel,
        out_shape=jax.ShapeDtypeStruct((B, OUT_FEATURES), jnp.float32),
        grid_spec=pl.GridSpec(
            grid=grid,
            in_specs=[
                # Batch-tiled activations, f32 straight from HBM.
                pl.BlockSpec((tb, IN_FEATURES), lambda i: (i, 0)),
                # Weights / biases: constant block index -> VMEM-resident
                # across all batch tiles (loaded once, never re-DMA'd).
                pl.BlockSpec((IN_FEATURES, HIDDEN_PAD), lambda i: (0, 0)),
                pl.BlockSpec((1, HIDDEN_PAD), lambda i: (0, 0)),
                pl.BlockSpec((HIDDEN_PAD, OUT_PAD), lambda i: (0, 0)),
                pl.BlockSpec((1, OUT_PAD), lambda i: (0, 0)),
            ],
            # Narrow (tb, 2) output block: last dim == full array dim (legal),
            # writeback is 64x smaller than the 128-lane padded slab.
            out_specs=pl.BlockSpec((tb, OUT_FEATURES), lambda i: (i, 0)),
        ),
        compiler_params=pltpu.CompilerParams(
            dimension_semantics=("parallel",),        # megacore-shardable batch axis
            vmem_limit_bytes=48 * 1024 * 1024,        # fits tb=4096; <= v7x 64 MiB
        ),
        cost_estimate=cost,
    )(x, w1p, b1p, w2p, b2p)

    return logits, None


def init_params(key, nb_hidden=250):
    """Deterministic init mimicking nn.Linear's U(-1/sqrt(fan_in), 1/sqrt(fan_in))."""
    k1, k2, k3, k4 = jax.random.split(key, 4)
    bound1 = 1.0 / jnp.sqrt(392.0)
    bound2 = 1.0 / jnp.sqrt(float(nb_hidden))
    w1 = jax.random.uniform(k1, (392, nb_hidden), jnp.float32, -bound1, bound1)
    b1 = jax.random.uniform(k2, (nb_hidden,), jnp.float32, -bound1, bound1)
    w2 = jax.random.uniform(k3, (nb_hidden, 2), jnp.float32, -bound2, bound2)
    b2 = jax.random.uniform(k4, (2,), jnp.float32, -bound2, bound2)
    return w1, b1, w2, b2


def _reference(x_nchw, w1, b1, w2, b2):
    x_flat = x_nchw.reshape(x_nchw.shape[0], IN_FEATURES)
    return jnp.maximum(x_flat @ w1 + b1, 0.0) @ w2 + b2


if __name__ == "__main__":
    key = jax.random.PRNGKey(0)
    kx, kp, kx2 = jax.random.split(key, 3)

    nb_hidden = 250
    w1, b1, w2, b2 = init_params(kp, nb_hidden)
    params = prepare_params(w1, b1, w2, b2)     # hoisted: pad/cast once

    # 1) Tiny B=2 path (pairs of 14x14 MNIST digits) forced through the Pallas
    #    kernel: single full-array block, no padding anywhere.
    x = jax.random.normal(kx, (2, 2, 14, 14), dtype=jnp.float32)
    logits, aux = linear_net_forward(x, params, min_pallas_batch=0)
    logits = jax.block_until_ready(logits)
    ref = _reference(x, w1, b1, w2, b2)
    assert logits.shape == (2, 2)
    assert aux is None
    # bf16 inputs/weights with f32 accumulation -> loosened tolerance.
    assert jnp.allclose(logits, ref, atol=5e-2, rtol=5e-2)

    # 2) Same tiny batch through the default dispatch (plain-XLA bypass).
    logits_xla, _ = linear_net_forward(x, params)
    logits_xla = jax.block_until_ready(logits_xla)
    assert jnp.allclose(logits_xla, ref, atol=5e-2, rtol=5e-2)

    # 3) Larger batch exercising the pipelined multi-step grid with a ragged
    #    last block (B=300 -> tb=80, grid=(4,), last block has 20 OOB rows
    #    whose outputs are dropped).
    x2 = jax.random.normal(kx2, (300, 2, 14, 14), dtype=jnp.float32)
    logits2, _ = linear_net_forward(x2, params)
    logits2 = jax.block_until_ready(logits2)
    ref2 = _reference(x2, w1, b1, w2, b2)
    assert logits2.shape == (300, 2)
    assert jnp.allclose(logits2, ref2, atol=5e-2, rtol=5e-2)

    print("KERNEL_OK")
</pallas_src>

<mosaic_0001>
module attributes {stable_mosaic.version = 11 : i64} {
  func.func @linear_net_kernel(%arg0: i32, %arg1: memref<2x392xf32, #tpu.memory_space<vmem>>, %arg2: memref<392x256xbf16, #tpu.memory_space<vmem>>, %arg3: memref<1x256xf32, #tpu.memory_space<vmem>>, %arg4: memref<256x128xbf16, #tpu.memory_space<vmem>>, %arg5: memref<1x128xf32, #tpu.memory_space<vmem>>, %arg6: memref<2x2xf32, #tpu.memory_space<vmem>>) attributes {dimension_semantics = [#tpu.dimension_semantics<parallel>], iteration_bounds = array<i64: 1>, scalar_prefetch = 0 : i64, scratch_operands = 0 : i64, tpu.core_type = #tpu.core_type<tc>, window_params = [{transform_indices = @transform_0, window_bounds = array<i64: 2, 392>}, {pipeline_mode = #tpu.pipeline_mode<synchronous>, transform_indices = @transform_1, window_bounds = array<i64: 392, 256>}, {pipeline_mode = #tpu.pipeline_mode<synchronous>, transform_indices = @transform_2, window_bounds = array<i64: 1, 256>}, {pipeline_mode = #tpu.pipeline_mode<synchronous>, transform_indices = @transform_3, window_bounds = array<i64: 256, 128>}, {pipeline_mode = #tpu.pipeline_mode<synchronous>, transform_indices = @transform_4, window_bounds = array<i64: 1, 128>}, {transform_indices = @transform_5, window_bounds = array<i64: 2, 2>}]} {
    %c0 = arith.constant 0 : index
    %c0_0 = arith.constant 0 : index
    %0 = vector.load %arg1[%c0, %c0_0] : memref<2x392xf32, #tpu.memory_space<vmem>>, vector<2x392xf32>
    %1 = arith.truncf %0 : vector<2x392xf32> to vector<2x392xbf16>
    %c0_1 = arith.constant 0 : index
    %c0_2 = arith.constant 0 : index
    %2 = vector.load %arg2[%c0_1, %c0_2] : memref<392x256xbf16, #tpu.memory_space<vmem>>, vector<392x256xbf16>
    %cst = arith.constant dense<0.000000e+00> : vector<2x256xf32>
    %3 = tpu.matmul %1, %2, %cst {dimension_numbers = #tpu.dot_dimension_numbers<[1], [0], [0], [1], [0, 0, 1, 1], [], []>} : vector<2x392xbf16>, vector<392x256xbf16>, vector<2x256xf32> -> vector<2x256xf32>
    %c0_3 = arith.constant 0 : index
    %c0_4 = arith.constant 0 : index
    %4 = vector.load %arg3[%c0_3, %c0_4] : memref<1x256xf32, #tpu.memory_space<vmem>>, vector<1x256xf32>
    %5 = vector.broadcast %4 : vector<1x256xf32> to vector<2x256xf32>
    %6 = arith.addf %3, %5 : vector<2x256xf32>
    %cst_5 = arith.constant 0.000000e+00 : f32
    %7 = vector.broadcast %cst_5 : f32 to vector<2x256xf32>
    %8 = arith.maximumf %6, %7 : vector<2x256xf32>
    %9 = arith.truncf %8 : vector<2x256xf32> to vector<2x256xbf16>
    %c0_6 = arith.constant 0 : index
    %c0_7 = arith.constant 0 : index
    %10 = vector.load %arg4[%c0_6, %c0_7] : memref<256x128xbf16, #tpu.memory_space<vmem>>, vector<256x128xbf16>
    %cst_8 = arith.constant dense<0.000000e+00> : vector<2x128xf32>
    %11 = tpu.matmul %9, %10, %cst_8 {dimension_numbers = #tpu.dot_dimension_numbers<[1], [0], [0], [1], [0, 0, 1, 1], [], []>} : vector<2x256xbf16>, vector<256x128xbf16>, vector<2x128xf32> -> vector<2x128xf32>
    %c0_9 = arith.constant 0 : index
    %c0_10 = arith.constant 0 : index
    %12 = vector.load %arg5[%c0_9, %c0_10] : memref<1x128xf32, #tpu.memory_space<vmem>>, vector<1x128xf32>
    %13 = vector.broadcast %12 : vector<1x128xf32> to vector<2x128xf32>
    %14 = arith.addf %11, %13 : vector<2x128xf32>
    %15 = vector.extract_strided_slice %14 {offsets = [0, 0], sizes = [2, 2], strides = [1, 1]} : vector<2x128xf32> to vector<2x2xf32>
    %c0_11 = arith.constant 0 : index
    %c0_12 = arith.constant 0 : index
    %16 = vector.load %arg6[%c0_11, %c0_12] : memref<2x2xf32, #tpu.memory_space<vmem>>, vector<2x2xf32>
    tpu.vector_store %arg6[%c0_11, %c0_12], %15 {strides = array<i32>} : memref<2x2xf32, #tpu.memory_space<vmem>>, vector<2x2xf32>,
    return
  }
  func.func @transform_0(%arg0: i32) -> (i32, i32) {
    %c0_i32 = arith.constant 0 : i32
    %c0_i32_0 = arith.constant 0 : i32
    return %arg0, %c0_i32 : i32, i32
  }
  func.func @transform_1(%arg0: i32) -> (i32, i32) {
    %c0_i32 = arith.constant 0 : i32
    %c0_i32_0 = arith.constant 0 : i32
    %c0_i32_1 = arith.constant 0 : i32
    return %c0_i32, %c0_i32_0 : i32, i32
  }
  func.func @transform_2(%arg0: i32) -> (i32, i32) {
    %c0_i32 = arith.constant 0 : i32
    %c0_i32_0 = arith.constant 0 : i32
    %c0_i32_1 = arith.constant 0 : i32
    return %c0_i32, %c0_i32_0 : i32, i32
  }
  func.func @transform_3(%arg0: i32) -> (i32, i32) {
    %c0_i32 = arith.constant 0 : i32
    %c0_i32_0 = arith.constant 0 : i32
    %c0_i32_1 = arith.constant 0 : i32
    return %c0_i32, %c0_i32_0 : i32, i32
  }
  func.func @transform_4(%arg0: i32) -> (i32, i32) {
    %c0_i32 = arith.constant 0 : i32
    %c0_i32_0 = arith.constant 0 : i32
    %c0_i32_1 = arith.constant 0 : i32
    return %c0_i32, %c0_i32_0 : i32, i32
  }
  func.func @transform_5(%arg0: i32) -> (i32, i32) {
    %c0_i32 = arith.constant 0 : i32
    %c0_i32_0 = arith.constant 0 : i32
    return %arg0, %c0_i32 : i32, i32
  }
}

</mosaic_0001>

<llo_original>
// kernel: tpu_custom_call.1
$region0: #{tpu_custom_call.1}
  #allocation0 [shape = 'u32[]', space=smem, size = 0x4, offset = 0x4, fixed_abs, tag = 'smem constant byte address 0x4 - core index']
  #allocation1 [shape = 'u32[144,128]{1,0:T(1,128)}', space=vmem, size = 0x12000, scoped, tag = 'internal scratch']
  %s0 = inlined_call_operand.hbm [shape: f32[2,392], index: 0, kind: input, shape index: {}]
  %s1 = inlined_call_operand.hbm [shape: bf16[392,256], index: 1, kind: input, shape index: {}]
  %s2 = inlined_call_operand.vmem [shape: f32[1,256], index: 2, kind: input, shape index: {}]
  %s3 = inlined_call_operand.hbm [shape: bf16[256,128], index: 3, kind: input, shape index: {}]
  %s4 = inlined_call_operand.vmem [shape: f32[1,128], index: 4, kind: input, shape index: {}]
  %s5 = inlined_call_operand.hbm [shape: f32[2,2], index: 5, kind: output, shape index: {}]
  %s6 = sld [smem:[#allocation0]]
  $region42: #{tpu_custom_call.1} parent=0
    _
  %s8 = ssub.s32 1, %s6
  %s9 = scalar_select 0, %s8, %s6
  $region1: #{tpu_custom_call.1} parent=0
    #allocation2 [shape = 'u8[4096]{0}', space=vmem, size = 0x1000, scoped, tag = 'input window, operand 0, single buffered']
    #allocation3 [shape = 's32[1]{0}', space=sflag, size = 0x4, scoped, tag = 'scoped memory for tpu_custom_call.1']
    #allocation4 [shape = 's32[1]{0}', space=sflag, size = 0x4, scoped, tag = 'scoped memory for tpu_custom_call.1']
    #allocation5 [shape = 'u8[200704]{0}', space=vmem, size = 0x31000, scoped, tag = 'input window, operand 1, single buffered']
    #allocation6 [shape = 's32[1]{0}', space=sflag, size = 0x4, scoped, tag = 'scoped memory for tpu_custom_call.1']
    #allocation7 [shape = 'u8[65536]{0}', space=vmem, size = 0x10000, scoped, tag = 'input window, operand 3, single buffered']
    #allocation8 [shape = 'u8[1024]{0}', space=vmem, size = 0x400, scoped, tag = 'output window, operand 0, single buffered']
    %10 = vsyncpa [#allocation3], 0
    %11 = vsyncpa [#allocation6], 0
    %12 = vsyncpa [#allocation4], 0
    // Predicated region
    $region2: #{tpu_custom_call.1} parent=1 // pred_check
      _
    $region3: #{tpu_custom_call.1} parent=1 // pred_check_branch
      %14 = sbr.rel (0) target = $region5
    $region4: #{tpu_custom_call.1} parent=1 // pred_region
      %s16 = ssub.s32 128, 128
      %17 = vsyncadd [#allocation3], %s16
      %s19 = sshll.u32 [#allocation2], 4
      %s20 = int_to_ptr.vmem [resolvable:$true] %s19
      %22 = dma.hbm_to_vmem [thread:$0]  %s0, 128, %s20, [#allocation3]
    $region5: #{tpu_custom_call.1} parent=1 // pred_fallthru
      _
    // Predicated region
    $region6: #{tpu_custom_call.1} parent=1 // pred_check
      _
    $region7: #{tpu_custom_call.1} parent=1 // pred_check_branch
      %24 = sbr.rel (0) target = $region9
    $region8: #{tpu_custom_call.1} parent=1 // pred_region
      %s26 = ssub.s32 6272, 6272
      %27 = vsyncadd [#allocation6], %s26
      %s28 = sshll.u32 [#allocation5], 4
      %s29 = int_to_ptr.vmem [resolvable:$true] %s28
      %34 = dma.hbm_to_vmem [thread:$0]  %s1, 6272, %s29, [#allocation6], 128, 128, 8
    $region9: #{tpu_custom_call.1} parent=1 // pred_fallthru
      _
    // Predicated region
    $region10: #{tpu_custom_call.1} parent=1 // pred_check
      _
    $region11: #{tpu_custom_call.1} parent=1 // pred_check_branch
      %36 = sbr.rel (0) target = $region13
    $region12: #{tpu_custom_call.1} parent=1 // pred_region
      _
    $region13: #{tpu_custom_call.1} parent=1 // pred_fallthru
      _
    // Predicated region
    $region14: #{tpu_custom_call.1} parent=1 // pred_check
      _
    $region15: #{tpu_custom_call.1} parent=1 // pred_check_branch
      %38 = sbr.rel (0) target = $region17
    $region16: #{tpu_custom_call.1} parent=1 // pred_region
      %s40 = ssub.s32 2048, 2048
      %41 = vsyncadd [#allocation6], %s40
      %s42 = sshll.u32 [#allocation7], 4
      %s43 = int_to_ptr.vmem [resolvable:$true] %s42
      %48 = dma.hbm_to_vmem [thread:$0]  %s3, 2048, %s43, [#allocation6], 64, 64, 4
    $region17: #{tpu_custom_call.1} parent=1 // pred_fallthru
      _
    // Predicated region
    $region18: #{tpu_custom_call.1} parent=1 // pred_check
      _
    $region19: #{tpu_custom_call.1} parent=1 // pred_check_branch
      %50 = sbr.rel (0) target = $region21
    $region20: #{tpu_custom_call.1} parent=1 // pred_region
      _
    $region21: #{tpu_custom_call.1} parent=1 // pred_fallthru
      _
    // Predicated region
    $region22: #{tpu_custom_call.1} parent=1 // pred_check
      _
    $region23: #{tpu_custom_call.1} parent=1 // pred_check_branch
      %52 = sbr.rel (0) target = $region25
    $region24: #{tpu_custom_call.1} parent=1 // pred_region
      %53 = dma.done [#allocation3], 128
    $region25: #{tpu_custom_call.1} parent=1 // pred_fallthru
      _
    // Predicated region
    $region26: #{tpu_custom_call.1} parent=1 // pred_check
      _
    $region27: #{tpu_custom_call.1} parent=1 // pred_check_branch
      %55 = sbr.rel (0) target = $region29
    $region28: #{tpu_custom_call.1} parent=1 // pred_region
      %56 = dma.done [#allocation6], 6272
    $region29: #{tpu_custom_call.1} parent=1 // pred_fallthru
      _
    // Predicated region
    $region30: #{tpu_custom_call.1} parent=1 // pred_check
      _
    $region31: #{tpu_custom_call.1} parent=1 // pred_check_branch
      %58 = sbr.rel (0) target = $region33
    $region32: #{tpu_custom_call.1} parent=1 // pred_region
      %59 = dma.done [#allocation6], 2048
    $region33: #{tpu_custom_call.1} parent=1 // pred_fallthru
      _
    %v61 = vld [vmem:[#allocation2] sm:$0xff]
    %v63 = vcombine.high %v61, %v61
    %v65 = vunpack.c.l.s4 1983009808
    %v66 = vunpack.c.0.s8 %v65
    %v67 = vlaneseq
    %v68 = vshrl.u32 %v67, 7
    %v69 = vsub.s32 %v66, %v68
    %v70 = vrot.slane %v61, %v69
    %v72 = vunpack.c.l.s4 1983009808
    %v73 = vunpack.c.0.s8 %v72
    %v74 = vlaneseq
    %v75 = vshrl.u32 %v74, 7
    %v76 = vsub.s32 %v73, %v75
    %v77 = vrot.slane %v63, %v76
    %v78 = vcombine.high %v70, %v70
    %v79 = vcombine.high %v77, %v77
    %v84 = vpack.c.bf16 %v70, %v70
    %v85 = vpack.c.bf16 %v78, %v78
    %v86 = vpack.c.bf16 %v77, %v77
    %v87 = vpack.c.bf16 %v79, %v79
    %v88 = vld [vmem:[#allocation5] sm:$0xff]
    %v89 = vld [vmem:[#allocation5 + $0x8] sm:$0xff]
    %v90 = vld [vmem:[#allocation5 + $0x10] sm:$0xff]
    %v91 = vld [vmem:[#allocation5 + $0x18] sm:$0xff]
    %v92 = vld [vmem:[#allocation5 + $0x20] sm:$0xff]
    %v93 = vld [vmem:[#allocation5 + $0x28] sm:$0xff]
    %v94 = vld [vmem:[#allocation5 + $0x30] sm:$0xff]
    %v95 = vld [vmem:[#allocation5 + $0x38] sm:$0xff]
    %v96 = vld [vmem:[#allocation5 + $0x40] sm:$0xff]
    %v97 = vld [vmem:[#allocation5 + $0x48] sm:$0xff]
    %v98 = vld [vmem:[#allocation5 + $0x50] sm:$0xff]
    %v99 = vld [vmem:[#allocation5 + $0x58] sm:$0xff]
    %v100 = vld [vmem:[#allocation5 + $0x60] sm:$0xff]
    %v101 = vld [vmem:[#allocation5 + $0x68] sm:$0xff]
    %v102 = vld [vmem:[#allocation5 + $0x70] sm:$0xff]
    %v103 = vld [vmem:[#allocation5 + $0x78] sm:$0xff]
    %v104 = vld [vmem:[#allocation5 + $0x80] sm:$0xff]
    %v105 = vld [vmem:[#allocation5 + $0x88] sm:$0xff]
    %v106 = vld [vmem:[#allocation5 + $0x90] sm:$0xff]
    %v107 = vld [vmem:[#allocation5 + $0x98] sm:$0xff]
    %v108 = vld [vmem:[#allocation5 + $0xa0] sm:$0xff]
    %v109 = vld [vmem:[#allocation5 + $0xa8] sm:$0xff]
    %v110 = vld [vmem:[#allocation5 + $0xb0] sm:$0xff]
    %v111 = vld [vmem:[#allocation5 + $0xb8] sm:$0xff]
    %v112 = vld [vmem:[#allocation5 + $0xc0] sm:$0xff]
    %v113 = vld [vmem:[#allocation5 + $0xc8] sm:$0xff]
    %v114 = vld [vmem:[#allocation5 + $0xd0] sm:$0xff]
    %v115 = vld [vmem:[#allocation5 + $0xd8] sm:$0xff]
    %v116 = vld [vmem:[#allocation5 + $0xe0] sm:$0xff]
    %v117 = vld [vmem:[#allocation5 + $0xe8] sm:$0xff]
    %v118 = vld [vmem:[#allocation5 + $0xf0] sm:$0xff]
    %v119 = vld [vmem:[#allocation5 + $0xf8] sm:$0xff]
    %v120 = vld [vmem:[#allocation5 + $0x100] sm:$0xff]
    %v121 = vld [vmem:[#allocation5 + $0x108] sm:$0xff]
    %v122 = vld [vmem:[#allocation5 + $0x110] sm:$0xff]
    %v123 = vld [vmem:[#allocation5 + $0x118] sm:$0xff]
    %v124 = vld [vmem:[#allocation5 + $0x120] sm:$0xff]
    %v125 = vld [vmem:[#allocation5 + $0x128] sm:$0xff]
    %v126 = vld [vmem:[#allocation5 + $0x130] sm:$0xff]
    %v127 = vld [vmem:[#allocation5 + $0x138] sm:$0xff]
    %v128 = vld [vmem:[#allocation5 + $0x140] sm:$0xff]
    %v129 = vld [vmem:[#allocation5 + $0x148] sm:$0xff]
    %v130 = vld [vmem:[#allocation5 + $0x150] sm:$0xff]
    %v131 = vld [vmem:[#allocation5 + $0x158] sm:$0xff]
    %v132 = vld [vmem:[#allocation5 + $0x160] sm:$0xff]
    %v133 = vld [vmem:[#allocation5 + $0x168] sm:$0xff]
    %v134 = vld [vmem:[#allocation5 + $0x170] sm:$0xff]
    %v135 = vld [vmem:[#allocation5 + $0x178] sm:$0xff]
    %v136 = vld [vmem:[#allocation5 + $0x180] sm:$0xff]
    %v137 = vld [vmem:[%s2] sm:$0x3]
    %v139 = vlaneseq
    %v140 = vshrl.u32 %v139, 7
    %v141 = vsub.s32 0, %v140
    %v142 = vrot.slane %v137, %v141
    %v143 = vlaneseq
    %v144 = vshrl.u32 %v143, 7
    %v145 = vsub.s32 1, %v144
    %v146 = vrot.slane %v137, %v145
    %v198 = vunpack.c.l.b16 %v88
    %v199 = vunpack.c.h.b16 %v88
    %v200 = vunpack.c.l.b16 %v89
    %v201 = vunpack.c.h.b16 %v89
    %v202 = vunpack.c.l.b16 %v90
    %v203 = vunpack.c.h.b16 %v90
    %v204 = vunpack.c.l.b16 %v91
    %v205 = vunpack.c.h.b16 %v91
    %v206 = vunpack.c.l.b16 %v92
    %v207 = vunpack.c.h.b16 %v92
    %v208 = vunpack.c.l.b16 %v93
    %v209 = vunpack.c.h.b16 %v93
    %v210 = vunpack.c.l.b16 %v94
    %v211 = vunpack.c.h.b16 %v94
    %v212 = vunpack.c.l.b16 %v95
    %v213 = vunpack.c.h.b16 %v95
    %v214 = vunpack.c.l.b16 %v96
    %v215 = vunpack.c.h.b16 %v96
    %v216 = vunpack.c.l.b16 %v97
    %v217 = vunpack.c.h.b16 %v97
    %v218 = vunpack.c.l.b16 %v98
    %v219 = vunpack.c.h.b16 %v98
    %v220 = vunpack.c.l.b16 %v99
    %v221 = vunpack.c.h.b16 %v99
    %v222 = vunpack.c.l.b16 %v100
    %v223 = vunpack.c.h.b16 %v100
    %v224 = vunpack.c.l.b16 %v101
    %v225 = vunpack.c.h.b16 %v101
    %v226 = vunpack.c.l.b16 %v102
    %v227 = vunpack.c.h.b16 %v102
    %v228 = vunpack.c.l.b16 %v103
    %v229 = vunpack.c.h.b16 %v103
    %v230 = vunpack.c.l.b16 %v104
    %v231 = vunpack.c.h.b16 %v104
    %v232 = vunpack.c.l.b16 %v105
    %v233 = vunpack.c.h.b16 %v105
    %v234 = vunpack.c.l.b16 %v106
    %v235 = vunpack.c.h.b16 %v106
    %v236 = vunpack.c.l.b16 %v107
    %v237 = vunpack.c.h.b16 %v107
    %v238 = vunpack.c.l.b16 %v108
    %v239 = vunpack.c.h.b16 %v108
    %v240 = vunpack.c.l.b16 %v109
    %v241 = vunpack.c.h.b16 %v109
    %v242 = vunpack.c.l.b16 %v110
    %v243 = vunpack.c.h.b16 %v110
    %v244 = vunpack.c.l.b16 %v111
    %v245 = vunpack.c.h.b16 %v111
    %v246 = vunpack.c.l.b16 %v112
    %v247 = vunpack.c.h.b16 %v112
    %v248 = vunpack.c.l.b16 %v113
    %v249 = vunpack.c.h.b16 %v113
    %v250 = vunpack.c.l.b16 %v114
    %v251 = vunpack.c.h.b16 %v114
    %v252 = vunpack.c.l.b16 %v115
    %v253 = vunpack.c.h.b16 %v115
    %v254 = vunpack.c.l.b16 %v116
    %v255 = vunpack.c.h.b16 %v116
    %v256 = vunpack.c.l.b16 %v117
    %v257 = vunpack.c.h.b16 %v117
    %v258 = vunpack.c.l.b16 %v118
    %v259 = vunpack.c.h.b16 %v118
    %v260 = vunpack.c.l.b16 %v119
    %v261 = vunpack.c.h.b16 %v119
    %v262 = vunpack.c.l.b16 %v120
    %v263 = vunpack.c.h.b16 %v120
    %v264 = vunpack.c.l.b16 %v121
    %v265 = vunpack.c.h.b16 %v121
    %v266 = vunpack.c.l.b16 %v122
    %v267 = vunpack.c.h.b16 %v122
    %v268 = vunpack.c.l.b16 %v123
    %v269 = vunpack.c.h.b16 %v123
    %v270 = vunpack.c.l.b16 %v124
    %v271 = vunpack.c.h.b16 %v124
    %v272 = vunpack.c.l.b16 %v125
    %v273 = vunpack.c.h.b16 %v125
    %v274 = vunpack.c.l.b16 %v126
    %v275 = vunpack.c.h.b16 %v126
    %v276 = vunpack.c.l.b16 %v127
    %v277 = vunpack.c.h.b16 %v127
    %v278 = vunpack.c.l.b16 %v128
    %v279 = vunpack.c.h.b16 %v128
    %v280 = vunpack.c.l.b16 %v129
    %v281 = vunpack.c.h.b16 %v129
    %v282 = vunpack.c.l.b16 %v130
    %v283 = vunpack.c.h.b16 %v130
    %v284 = vunpack.c.l.b16 %v131
    %v285 = vunpack.c.h.b16 %v131
    %v286 = vunpack.c.l.b16 %v132
    %v287 = vunpack.c.h.b16 %v132
    %v288 = vunpack.c.l.b16 %v133
    %v289 = vunpack.c.h.b16 %v133
    %v290 = vunpack.c.l.b16 %v134
    %v291 = vunpack.c.h.b16 %v134
    %v292 = vunpack.c.l.b16 %v135
    %v293 = vunpack.c.h.b16 %v135
    %v294 = vunpack.c.l.b16 %v136
    %v295 = vunpack.c.h.b16 %v136
    %v296 = vpack.c.b16 %v200, %v198
    %v297 = vpack.c.b16 %v201, %v199
    %v298 = vpack.c.b16 %v204, %v202
    %v299 = vpack.c.b16 %v205, %v203
    %v300 = vpack.c.b16 %v208, %v206
    %v301 = vpack.c.b16 %v209, %v207
    %v302 = vpack.c.b16 %v212, %v210
    %v303 = vpack.c.b16 %v213, %v211
    %v304 = vpack.c.b16 %v216, %v214
    %v305 = vpack.c.b16 %v217, %v215
    %v306 = vpack.c.b16 %v220, %v218
    %v307 = vpack.c.b16 %v221, %v219
    %v308 = vpack.c.b16 %v224, %v222
    %v309 = vpack.c.b16 %v225, %v223
    %v310 = vpack.c.b16 %v228, %v226
    %v311 = vpack.c.b16 %v229, %v227
    %v312 = vpack.c.b16 %v232, %v230
    %v313 = vpack.c.b16 %v233, %v231
    %v314 = vpack.c.b16 %v236, %v234
    %v315 = vpack.c.b16 %v237, %v235
    %v316 = vpack.c.b16 %v240, %v238
    %v317 = vpack.c.b16 %v241, %v239
    %v318 = vpack.c.b16 %v244, %v242
    %v319 = vpack.c.b16 %v245, %v243
    %v320 = vpack.c.b16 %v248, %v246
    %v321 = vpack.c.b16 %v249, %v247
    %v322 = vpack.c.b16 %v252, %v250
    %v323 = vpack.c.b16 %v253, %v251
    %v324 = vpack.c.b16 %v256, %v254
    %v325 = vpack.c.b16 %v257, %v255
    %v326 = vpack.c.b16 %v260, %v258
    %v327 = vpack.c.b16 %v261, %v259
    %v328 = vpack.c.b16 %v264, %v262
    %v329 = vpack.c.b16 %v265, %v263
    %v330 = vpack.c.b16 %v268, %v266
    %v331 = vpack.c.b16 %v269, %v267
    %v332 = vpack.c.b16 %v272, %v270
    %v333 = vpack.c.b16 %v273, %v271
    %v334 = vpack.c.b16 %v276, %v274
    %v335 = vpack.c.b16 %v277, %v275
    %v336 = vpack.c.b16 %v280, %v278
    %v337 = vpack.c.b16 %v281, %v279
    %v338 = vpack.c.b16 %v284, %v282
    %v339 = vpack.c.b16 %v285, %v283
    %v340 = vpack.c.b16 %v288, %v286
    %v341 = vpack.c.b16 %v289, %v287
    %v342 = vpack.c.b16 %v292, %v290
    %v343 = vpack.c.b16 %v293, %v291
    %v344 = vpack.c.b16 %v294, %v294
    %v345 = vpack.c.b16 %v295, %v295
    %vm394 = vcmask 64512
    %v396 = vsel %vm394, %v87, 0
    %vm398 = vcmask 1043456
    %v400 = vsel %vm398, %v344, 0
    %v403 = vsel %vm398, %v345, 0
    %405 = vmatprep.subr.bf16.mxu0 %v311
    %406 = vmatpush1.bf16.msra.mxu0 %v310
    %407 = vmatprep.subr.bf16.mxu0 %v309
    %408 = vmatpush1.bf16.msra.mxu0 %v308
    %409 = vmatprep.subr.bf16.mxu0 %v307
    %410 = vmatpush1.bf16.msra.mxu0 %v306
    %411 = vmatprep.subr.bf16.mxu0 %v305
    %412 = vmatpush1.bf16.msra.mxu0 %v304
    %413 = vmatprep.subr.bf16.mxu0 %v303
    %414 = vmatpush1.bf16.msra.mxu0 %v302
    %415 = vmatprep.subr.bf16.mxu0 %v301
    %416 = vmatpush1.bf16.msra.mxu0 %v300
    %417 = vmatprep.subr.bf16.mxu0 %v299
    %418 = vmatpush1.bf16.msra.mxu0 %v298
    %419 = vmatprep.subr.bf16.mxu0 %v297
    %420 = vmatpush1.bf16.msra.mxu0 %v296
    %421 = vmatprep.subr.bf16.mxu0 %v327
    %422 = vmatpush2.bf16.msra.mxu0 %v326
    %423 = vmatprep.subr.bf16.mxu0 %v325
    %424 = vmatpush2.bf16.msra.mxu0 %v324
    %425 = vmatprep.subr.bf16.mxu0 %v323
    %426 = vmatpush2.bf16.msra.mxu0 %v322
    %427 = vmatprep.subr.bf16.mxu0 %v321
    %428 = vmatpush2.bf16.msra.mxu0 %v320
    %429 = vmatprep.subr.bf16.mxu0 %v319
    %430 = vmatpush2.bf16.msra.mxu0 %v318
    %431 = vmatprep.subr.bf16.mxu0 %v317
    %432 = vmatpush2.bf16.msra.mxu0 %v316
    %433 = vmatprep.subr.bf16.mxu0 %v315
    %434 = vmatpush2.bf16.msra.mxu0 %v314
    %435 = vmatprep.subr.bf16.mxu0 %v313
    %436 = vmatpush2.bf16.msra.mxu0 %v312
    %437 = vmatprep.mubr.bf16.mxu0 %v85
    %438 = vmatmul.mubr.bf16.gmra.mxu0 %v84
    %v439 = vpop.f32.mrf.mxu0
    %v440 = vadd.f32 %v142, %v439
    %v441 = vpop.f32.mrf.mxu0
    %v442 = vadd.f32 %v146, %v441
    %v443 = vpop.f32.mrf.mxu0
    %v444 = vpop.f32.mrf.mxu0
    %445 = vdwg.mxu0
    %446 = vmatprep.subr.bf16.mxu0 %v343
    %447 = vmatpush1.bf16.msra.mxu0 %v342
    %448 = vmatprep.subr.bf16.mxu0 %v341
    %449 = vmatpush1.bf16.msra.mxu0 %v340
    %450 = vmatprep.subr.bf16.mxu0 %v339
    %451 = vmatpush1.bf16.msra.mxu0 %v338
    %452 = vmatprep.subr.bf16.mxu0 %v337
    %453 = vmatpush1.bf16.msra.mxu0 %v336
    %454 = vmatprep.subr.bf16.mxu0 %v335
    %455 = vmatpush1.bf16.msra.mxu0 %v334
    %456 = vmatprep.subr.bf16.mxu0 %v333
    %457 = vmatpush1.bf16.msra.mxu0 %v332
    %458 = vmatprep.subr.bf16.mxu0 %v331
    %459 = vmatpush1.bf16.msra.mxu0 %v330
    %460 = vmatprep.subr.bf16.mxu0 %v329
    %461 = vmatpush1.bf16.msra.mxu0 %v328
    %462 = vmatprep.subr.bf16.mxu0 0
    %463 = vmatpush2.bf16.msra.mxu0 0
    %464 = vmatprep.subr.bf16.mxu0 0
    %465 = vmatpush2.bf16.msra.mxu0 0
    %466 = vmatprep.subr.bf16.mxu0 0
    %467 = vmatpush2.bf16.msra.mxu0 0
    %468 = vmatprep.subr.bf16.mxu0 0
    %469 = vmatpush2.bf16.msra.mxu0 0
    %470 = vmatprep.subr.bf16.mxu0 0
    %471 = vmatpush2.bf16.msra.mxu0 0
    %472 = vmatprep.subr.bf16.mxu0 0
    %473 = vmatpush2.bf16.msra.mxu0 0
    %474 = vmatprep.subr.bf16.mxu0 0
    %475 = vmatpush2.bf16.msra.mxu0 0
    %476 = vmatprep.subr.bf16.mxu0 %v403
    %477 = vmatpush2.bf16.msra.mxu0 %v400
    %478 = vmatprep.mubr.bf16.mxu0 %v396
    %479 = vmatmul.mubr.bf16.gmra.mxu0 %v86
    %v480 = vpop.f32.mrf.mxu0
    %v481 = vadd.f32 %v440, %v480
    %v482 = vpop.f32.mrf.mxu0
    %v483 = vadd.f32 %v442, %v482
    %v484 = vpop.f32.mrf.mxu0
    %v485 = vpop.f32.mrf.mxu0
    %486 = vdwg.mxu0
    %v487 = vmax.f32 %v481, 0.0
    %v488 = vmax.f32 %v483, 0.0
    %v489 = vpack.c.bf16 %v487, %v487
    %v490 = vpack.c.bf16 %v488, %v488
    %v491 = vld [vmem:[#allocation7] sm:$0xf]
    %v492 = vld [vmem:[#allocation7 + $0x4] sm:$0xf]
    %v493 = vld [vmem:[#allocation7 + $0x8] sm:$0xf]
    %v494 = vld [vmem:[#allocation7 + $0xc] sm:$0xf]
    %v495 = vld [vmem:[#allocation7 + $0x10] sm:$0xf]
    %v496 = vld [vmem:[#allocation7 + $0x14] sm:$0xf]
    %v497 = vld [vmem:[#allocation7 + $0x18] sm:$0xf]
    %v498 = vld [vmem:[#allocation7 + $0x1c] sm:$0xf]
    %v499 = vld [vmem:[#allocation7 + $0x20] sm:$0xf]
    %v500 = vld [vmem:[#allocation7 + $0x24] sm:$0xf]
    %v501 = vld [vmem:[#allocation7 + $0x28] sm:$0xf]
    %v502 = vld [vmem:[#allocation7 + $0x2c] sm:$0xf]
    %v503 = vld [vmem:[#allocation7 + $0x30] sm:$0xf]
    %v504 = vld [vmem:[#allocation7 + $0x34] sm:$0xf]
    %v505 = vld [vmem:[#allocation7 + $0x38] sm:$0xf]
    %v506 = vld [vmem:[#allocation7 + $0x3c] sm:$0xf]
    %v507 = vld [vmem:[#allocation7 + $0x40] sm:$0xf]
    %v508 = vld [vmem:[#allocation7 + $0x44] sm:$0xf]
    %v509 = vld [vmem:[#allocation7 + $0x48] sm:$0xf]
    %v510 = vld [vmem:[#allocation7 + $0x4c] sm:$0xf]
    %v511 = vld [vmem:[#allocation7 + $0x50] sm:$0xf]
    %v512 = vld [vmem:[#allocation7 + $0x54] sm:$0xf]
    %v513 = vld [vmem:[#allocation7 + $0x58] sm:$0xf]
    %v514 = vld [vmem:[#allocation7 + $0x5c] sm:$0xf]
    %v515 = vld [vmem:[#allocation7 + $0x60] sm:$0xf]
    %v516 = vld [vmem:[#allocation7 + $0x64] sm:$0xf]
    %v517 = vld [vmem:[#allocation7 + $0x68] sm:$0xf]
    %v518 = vld [vmem:[#allocation7 + $0x6c] sm:$0xf]
    %v519 = vld [vmem:[#allocation7 + $0x70] sm:$0xf]
    %v520 = vld [vmem:[#allocation7 + $0x74] sm:$0xf]
    %v521 = vld [vmem:[#allocation7 + $0x78] sm:$0xf]
    %v522 = vld [vmem:[#allocation7 + $0x7c] sm:$0xf]
    %v523 = vld [vmem:[%s4] sm:$0x1]
    %v525 = vlaneseq
    %v526 = vshrl.u32 %v525, 7
    %v527 = vsub.s32 0, %v526
    %v528 = vrot.slane %v523, %v527
    %v562 = vunpack.c.l.b16 %v491
    %v563 = vunpack.c.l.b16 %v492
    %v564 = vunpack.c.l.b16 %v493
    %v565 = vunpack.c.l.b16 %v494
    %v566 = vunpack.c.l.b16 %v495
    %v567 = vunpack.c.l.b16 %v496
    %v568 = vunpack.c.l.b16 %v497
    %v569 = vunpack.c.l.b16 %v498
    %v570 = vunpack.c.l.b16 %v499
    %v571 = vunpack.c.l.b16 %v500
    %v572 = vunpack.c.l.b16 %v501
    %v573 = vunpack.c.l.b16 %v502
    %v574 = vunpack.c.l.b16 %v503
    %v575 = vunpack.c.l.b16 %v504
    %v576 = vunpack.c.l.b16 %v505
    %v577 = vunpack.c.l.b16 %v506
    %v578 = vunpack.c.l.b16 %v507
    %v579 = vunpack.c.l.b16 %v508
    %v580 = vunpack.c.l.b16 %v509
    %v581 = vunpack.c.l.b16 %v510
    %v582 = vunpack.c.l.b16 %v511
    %v583 = vunpack.c.l.b16 %v512
    %v584 = vunpack.c.l.b16 %v513
    %v585 = vunpack.c.l.b16 %v514
    %v586 = vunpack.c.l.b16 %v515
    %v587 = vunpack.c.l.b16 %v516
    %v588 = vunpack.c.l.b16 %v517
    %v589 = vunpack.c.l.b16 %v518
    %v590 = vunpack.c.l.b16 %v519
    %v591 = vunpack.c.l.b16 %v520
    %v592 = vunpack.c.l.b16 %v521
    %v593 = vunpack.c.l.b16 %v522
    %v594 = vpack.c.b16 %v563, %v562
    %v595 = vpack.c.b16 %v565, %v564
    %v596 = vpack.c.b16 %v567, %v566
    %v597 = vpack.c.b16 %v569, %v568
    %v598 = vpack.c.b16 %v571, %v570
    %v599 = vpack.c.b16 %v573, %v572
    %v600 = vpack.c.b16 %v575, %v574
    %v601 = vpack.c.b16 %v577, %v576
    %v602 = vpack.c.b16 %v579, %v578
    %v603 = vpack.c.b16 %v581, %v580
    %v604 = vpack.c.b16 %v583, %v582
    %v605 = vpack.c.b16 %v585, %v584
    %v606 = vpack.c.b16 %v587, %v586
    %v607 = vpack.c.b16 %v589, %v588
    %v608 = vpack.c.b16 %v591, %v590
    %v609 = vpack.c.b16 %v593, %v592
    %626 = vmatprep.subr.bf16.mxu0 0
    %627 = vmatpush1.bf16.msra.mxu0 %v601
    %628 = vmatprep.subr.bf16.mxu0 0
    %629 = vmatpush1.bf16.msra.mxu0 %v600
    %630 = vmatprep.subr.bf16.mxu0 0
    %631 = vmatpush1.bf16.msra.mxu0 %v599
    %632 = vmatprep.subr.bf16.mxu0 0
    %633 = vmatpush1.bf16.msra.mxu0 %v598
    %634 = vmatprep.subr.bf16.mxu0 0
    %635 = vmatpush1.bf16.msra.mxu0 %v597
    %636 = vmatprep.subr.bf16.mxu0 0
    %637 = vmatpush1.bf16.msra.mxu0 %v596
    %638 = vmatprep.subr.bf16.mxu0 0
    %639 = vmatpush1.bf16.msra.mxu0 %v595
    %640 = vmatprep.subr.bf16.mxu0 0
    %641 = vmatpush1.bf16.msra.mxu0 %v594
    %642 = vmatprep.subr.bf16.mxu0 0
    %643 = vmatpush2.bf16.msra.mxu0 %v609
    %644 = vmatprep.subr.bf16.mxu0 0
    %645 = vmatpush2.bf16.msra.mxu0 %v608
    %646 = vmatprep.subr.bf16.mxu0 0
    %647 = vmatpush2.bf16.msra.mxu0 %v607
    %648 = vmatprep.subr.bf16.mxu0 0
    %649 = vmatpush2.bf16.msra.mxu0 %v606
    %650 = vmatprep.subr.bf16.mxu0 0
    %651 = vmatpush2.bf16.msra.mxu0 %v605
    %652 = vmatprep.subr.bf16.mxu0 0
    %653 = vmatpush2.bf16.msra.mxu0 %v604
    %654 = vmatprep.subr.bf16.mxu0 0
    %655 = vmatpush2.bf16.msra.mxu0 %v603
    %656 = vmatprep.subr.bf16.mxu0 0
    %657 = vmatpush2.bf16.msra.mxu0 %v602
    %658 = vmatprep.mubr.bf16.mxu0 %v490
    %659 = vmatmul.mubr.bf16.gmra.mxu0 %v489
    %v660 = vpop.f32.mrf.mxu0
    %v661 = vadd.f32 %v528, %v660
    %v662 = vpop.f32.mrf.mxu0
    %v663 = vpop.f32.mrf.mxu0
    %v664 = vpop.f32.mrf.mxu0
    %665 = vdwg.mxu0
    %vm666 = vcmask 9216
    %667 = vst.msk [vmem:[#allocation8] sm:$0x3] %vm666, %v661
    // Predicated region
    $region34: #{tpu_custom_call.1} parent=1 // pred_check
      _
    $region35: #{tpu_custom_call.1} parent=1 // pred_check_branch
      %669 = sbr.rel (0) target = $region37
    $region36: #{tpu_custom_call.1} parent=1 // pred_region
      %s671 = ssub.s32 32, 32
      %672 = vsyncadd [#allocation4], %s671
      %s674 = sshll.u32 [#allocation8], 4
      %s675 = int_to_ptr.vmem [resolvable:$true] %s674
      %677 = dma.vmem_to_hbm [thread:$0]  %s675, 32, %s5, [#allocation4]
    $region37: #{tpu_custom_call.1} parent=1 // pred_fallthru
      _
    // Predicated region
    $region38: #{tpu_custom_call.1} parent=1 // pred_check
      _
    $region39: #{tpu_custom_call.1} parent=1 // pred_check_branch
      %679 = sbr.rel (0) target = $region41
    $region40: #{tpu_custom_call.1} parent=1 // pred_region
      %680 = dma.done [#allocation4], 32
    $region41: #{tpu_custom_call.1} parent=1 // pred_fallthru
      _
    %681 = vsyncpa [#allocation3], 1
    %682 = vsyncpa [#allocation6], 1
    %683 = vsyncpa [#allocation4], 1

</llo_original>
